<compile_context>
chip_gen: v7x
topology: tpu7x:2x2x1
jax: 0.10.0
libtpu: 0.0.40
codegen_flags: <defaults>
</compile_context>

<pallas_src>
import functools

import jax
import jax.numpy as jnp
from jax import lax
from jax.experimental import pallas as pl
from jax.experimental.pallas import tpu as pltpu

LANES = 128
ACC_ROWS = 32                    # lane-parallel f32 accumulator rows (4 vregs)
DEFAULT_CHUNK_ROWS = 512         # rows per inner-loop step (<= 256 KiB f32 temp)
DEFAULT_BLOCK_BYTES = 16 << 20   # per-grid-step HBM block (double-buffered)


def _cdiv(a, b):
    return -(-a // b)


def _num_tensorcores():
    """Best-effort TensorCores-per-chip: 2 on v7x, else 1 (v5e/v6e)."""
    try:
        kind = jax.devices()[0].device_kind.lower()
    except Exception:
        return 1
    return 2 if ("v7" in kind or "7x" in kind) else 1


def _partial_sum_kernel(x_ref, out_ref, acc_ref, *, rows, block_rows, chunk_rows,
                        acc_rows, blocks_per_core, ragged):
    """Accumulate lane-parallel partial sums of one (block_rows, 128) block.

    out_ref (8, 128) holds this core's UNSCALED partial sums after its last
    block; the wrapper applies sign/N and the final cross-lane reduce.
    """
    c = pl.program_id(0)
    j = pl.program_id(1)

    @pl.when(j == 0)
    def _():
        acc_ref[...] = jnp.zeros_like(acc_ref)

    n_chunks = block_rows // chunk_rows
    fold = chunk_rows // acc_rows

    def accumulate(masked, limit):
        # Stream the block in chunk_rows-row slices: avoids full-block f32
        # upcast temporaries and keeps per-chunk work at vreg scale.  Each
        # chunk folds into `acc_rows` independent lane accumulators, so the
        # only serial dependency is one (acc_rows,128) add per chunk.
        def body(i, acc):
            r0 = pl.multiple_of(i * chunk_rows, chunk_rows)
            x = x_ref[pl.ds(r0, chunk_rows), :].astype(jnp.float32)
            if masked:
                row_ids = lax.broadcasted_iota(jnp.int32, (chunk_rows, LANES), 0)
                x = jnp.where(row_ids < limit - i * chunk_rows, x, 0.0)
            if fold > 1:
                x = jnp.sum(x.reshape(fold, acc_rows, LANES), axis=0)
            return acc + x

        part = lax.fori_loop(0, n_chunks, body,
                             jnp.zeros((acc_rows, LANES), jnp.float32),
                             unroll=min(8, n_chunks))
        acc_ref[...] += part

    if ragged:
        # Only boundary / duplicated (clamped) blocks pay for iota + select;
        # interior blocks take the unmasked path.
        limit = rows - (c * blocks_per_core + j) * block_rows

        @pl.when(limit >= block_rows)
        def _():
            accumulate(False, limit)

        @pl.when(limit < block_rows)
        def _():
            accumulate(True, limit)
    else:
        accumulate(False, block_rows)

    @pl.when(j == pl.num_programs(1) - 1)
    def _():
        a = acc_ref[...]
        if acc_rows > 8:
            a = jnp.sum(a.reshape(acc_rows // 8, 8, LANES), axis=0)
        out_ref[...] = a


def wgan_gp_loss(pred_logits, real=True, *, block_bytes=DEFAULT_BLOCK_BYTES,
                 chunk_rows=DEFAULT_CHUNK_ROWS, num_cores=None,
                 use_pallas=None, min_pallas_bytes=1 << 20):
    """Returns -mean(pred_logits) if real else mean(pred_logits) as f32 scalar."""
    sign = -1.0 if real else 1.0
    x = pred_logits.reshape(-1)
    n = int(x.shape[0])
    itemsize = x.dtype.itemsize

    if use_pallas is None:
        # Tiny inputs (typical patch-discriminator logits) are dominated by
        # pallas_call fixed cost; XLA's fused reduce is already at the roofline.
        use_pallas = n * itemsize >= min_pallas_bytes
    if (not use_pallas) or n < 8 * LANES:
        return sign * jnp.mean(x.astype(jnp.float32))

    if n % LANES:
        # TODO(synk): stream a 1-D view with element-level in-kernel masking to
        # avoid this padded HBM copy (only taken when n % 128 != 0).
        x = jnp.pad(x, (0, LANES - n % LANES))
    rows = x.shape[0] // LANES
    x2d = x.reshape(rows, LANES)          # copy-free view of a contiguous buffer

    # --- block / chunk geometry --------------------------------------------
    acc_rows = ACC_ROWS if rows >= ACC_ROWS else 8
    cr = max(acc_rows, min(chunk_rows, rows) // acc_rows * acc_rows)
    chunks_per_block = max(1, min(block_bytes // (cr * LANES * itemsize),
                                  rows // cr))
    block_rows = cr * chunks_per_block
    total_blocks = _cdiv(rows, block_rows)

    if num_cores is None:
        num_cores = _num_tensorcores()    # 2 on v7x, 1 on v5e/v6e
    num_cores = max(1, min(num_cores, total_blocks))
    bpc = _cdiv(total_blocks, num_cores)
    ragged = num_cores * bpc * block_rows != rows

    kernel = functools.partial(
        _partial_sum_kernel, rows=rows, block_rows=block_rows, chunk_rows=cr,
        acc_rows=acc_rows, blocks_per_core=bpc, ragged=ragged)

    in_spec = pl.BlockSpec(
        (block_rows, LANES),
        # Clamp so a duplicated trailing block never starts out of bounds; its
        # unclamped id gives limit <= 0, so the in-kernel mask zeroes it.
        lambda c, j: (jnp.minimum(c * bpc + j, total_blocks - 1), 0))
    out_spec = pl.BlockSpec((8, LANES), lambda c, j: (c, 0))

    if num_cores > 1:
        dims = (getattr(pltpu, "CORE_PARALLEL", "parallel"),
                getattr(pltpu, "ARBITRARY", "arbitrary"))
    else:
        dims = ("arbitrary", "arbitrary")

    vmem_limit = min(100 << 20, 2 * block_rows * LANES * itemsize + (16 << 20))

    partials = pl.pallas_call(
        kernel,
        out_shape=jax.ShapeDtypeStruct((num_cores * 8, LANES), jnp.float32),
        grid_spec=pltpu.PrefetchScalarGridSpec(
            num_scalar_prefetch=0,
            grid=(num_cores, bpc),
            in_specs=[in_spec],
            out_specs=out_spec,
            scratch_shapes=[pltpu.VMEM((acc_rows, LANES), jnp.float32)],
        ),
        compiler_params=pltpu.CompilerParams(
            dimension_semantics=dims,
            vmem_limit_bytes=vmem_limit,
        ),
        cost_estimate=pl.CostEstimate(
            flops=n, transcendentals=0,
            bytes_accessed=n * itemsize + num_cores * 8 * LANES * 4),
    )(x2d)

    # Tiny epilogue: cross-lane reduce of <= 2*8*128 f32 partials + sign/N scale
    # (scale stays outside the kernel, so real=True/False share the executable).
    return (sign / float(n)) * jnp.sum(partials)


if __name__ == "__main__":
    key = jax.random.PRNGKey(0)

    # pred_logits from a discriminator, e.g. [B, C, H', W'] patch logits.
    pred_logits = jax.random.normal(key, (2, 4, 16, 16), dtype=jnp.float32)

    def check(out, ref, tag):
        out, ref = jax.block_until_ready((out, ref))
        assert jnp.allclose(out, ref, atol=1e-5, rtol=1e-4), (tag, out, ref)

    # Small demo shape: force the Pallas path (auto mode would short-circuit).
    check(wgan_gp_loss(pred_logits, real=True, use_pallas=True),
          -jnp.mean(pred_logits), "real")
    check(wgan_gp_loss(pred_logits, real=False, use_pallas=True),
          jnp.mean(pred_logits), "fake")
    # Auto mode on a tiny input takes the jnp.mean short-circuit.
    check(wgan_gp_loss(pred_logits, real=True), -jnp.mean(pred_logits), "auto-small")

    # Multi-block + ragged boundary (40 rows, 32-row blocks).
    x2 = jax.random.normal(jax.random.PRNGKey(1), (5, 1, 32, 32), dtype=jnp.float32)
    check(wgan_gp_loss(x2, real=True, use_pallas=True, block_bytes=8 * 1024),
          -jnp.mean(x2), "ragged")

    # n not a multiple of 128 (pad path) + ragged boundary block.
    x3 = jax.random.normal(jax.random.PRNGKey(2), (3, 5, 33, 40), dtype=jnp.float32)
    check(wgan_gp_loss(x3, real=True, use_pallas=True, block_bytes=64 * 1024),
          -jnp.mean(x3), "unaligned")

    # bf16 input: chunked upcast + masked boundary block.
    x4 = jax.random.normal(jax.random.PRNGKey(3), (8, 3, 64, 64)).astype(jnp.bfloat16)
    check(wgan_gp_loss(x4, real=False, use_pallas=True),
          jnp.mean(x4.astype(jnp.float32)), "bf16")

    # 2 MiB input: auto mode picks the kernel; multi-chunk fori + multi-block grid.
    x5 = jax.random.normal(jax.random.PRNGKey(4), (16, 8, 64, 64), dtype=jnp.float32)
    check(wgan_gp_loss(x5, real=True, block_bytes=512 * 1024),
          -jnp.mean(x5), "multi-chunk")

    print("KERNEL_OK")
</pallas_src>

<mosaic_0001>
module attributes {stable_mosaic.version = 11 : i64} {
  func.func @_partial_sum_kernel(%arg0: i32, %arg1: i32, %arg2: memref<16x128xf32, #tpu.memory_space<vmem>>, %arg3: memref<8x128xf32, #tpu.memory_space<vmem>>, %arg4: memref<8x128xf32, #tpu.memory_space<vmem>>) attributes {dimension_semantics = [#tpu.dimension_semantics<arbitrary>, #tpu.dimension_semantics<arbitrary>], iteration_bounds = array<i64: 1, 1>, scalar_prefetch = 0 : i64, scratch_operands = 1 : i64, tpu.core_type = #tpu.core_type<tc>, window_params = [{transform_indices = @transform_0, window_bounds = array<i64: 16, 128>}, {transform_indices = @transform_1, window_bounds = array<i64: 8, 128>}]} {
    %c0_i32 = arith.constant 0 : i32
    %0 = arith.cmpi eq, %arg1, %c0_i32 : i32
    %1 = arith.extui %0 : i1 to i32
    %c0_i32_0 = arith.constant 0 : i32
    %2 = arith.cmpi ne, %1, %c0_i32_0 : i32
    scf.if %2 {
      %cst_9 = arith.constant 0.000000e+00 : f32
      %17 = vector.broadcast %cst_9 : f32 to vector<8x128xf32>
      %c0_10 = arith.constant 0 : index
      %c0_11 = arith.constant 0 : index
      %18 = vector.load %arg4[%c0_10, %c0_11] : memref<8x128xf32, #tpu.memory_space<vmem>>, vector<8x128xf32>
      tpu.vector_store %arg4[%c0_10, %c0_11], %17 {strides = array<i32>} : memref<8x128xf32, #tpu.memory_space<vmem>>, vector<8x128xf32>,
    } else {
    }
    %cst = arith.constant 0.000000e+00 : f32
    %3 = vector.broadcast %cst : f32 to vector<8x128xf32>
    %c0_i32_1 = arith.constant 0 : i32
    %c16_i32 = arith.constant 16 : i32
    %4 = arith.muli %c0_i32_1, %c16_i32 : i32
    %5 = tpu.assume_multiple %4, 16 : i32
    %6 = arith.index_cast %5 : i32 to index
    %c0 = arith.constant 0 : index
    %7 = vector.load %arg2[%6, %c0] : memref<16x128xf32, #tpu.memory_space<vmem>>, vector<16x128xf32>
    %8 = vector.shape_cast %7 : vector<16x128xf32> to vector<2x8x128xf32>
    %cst_2 = arith.constant dense<0.000000e+00> : vector<8x128xf32>
    %9 = vector.multi_reduction <add>, %8, %cst_2 [0] : vector<2x8x128xf32> to vector<8x128xf32>
    %10 = arith.addf %3, %9 : vector<8x128xf32>
    %c1_i32 = arith.constant 1 : i32
    %c0_3 = arith.constant 0 : index
    %c0_4 = arith.constant 0 : index
    %11 = vector.load %arg4[%c0_3, %c0_4] : memref<8x128xf32, #tpu.memory_space<vmem>>, vector<8x128xf32>
    %12 = arith.addf %11, %10 : vector<8x128xf32>
    %c0_5 = arith.constant 0 : index
    %c0_6 = arith.constant 0 : index
    %13 = vector.load %arg4[%c0_5, %c0_6] : memref<8x128xf32, #tpu.memory_space<vmem>>, vector<8x128xf32>
    tpu.vector_store %arg4[%c0_5, %c0_6], %12 {strides = array<i32>} : memref<8x128xf32, #tpu.memory_space<vmem>>, vector<8x128xf32>,
    %c0_i32_7 = arith.constant 0 : i32
    %14 = arith.cmpi eq, %arg1, %c0_i32_7 : i32
    %15 = arith.extui %14 : i1 to i32
    %c0_i32_8 = arith.constant 0 : i32
    %16 = arith.cmpi ne, %15, %c0_i32_8 : i32
    scf.if %16 {
      %c0_9 = arith.constant 0 : index
      %c0_10 = arith.constant 0 : index
      %17 = vector.load %arg4[%c0_9, %c0_10] : memref<8x128xf32, #tpu.memory_space<vmem>>, vector<8x128xf32>
      %c0_11 = arith.constant 0 : index
      %c0_12 = arith.constant 0 : index
      %18 = vector.load %arg3[%c0_11, %c0_12] : memref<8x128xf32, #tpu.memory_space<vmem>>, vector<8x128xf32>
      tpu.vector_store %arg3[%c0_11, %c0_12], %17 {strides = array<i32>} : memref<8x128xf32, #tpu.memory_space<vmem>>, vector<8x128xf32>,
    } else {
    }
    return
  }
  func.func @transform_0(%arg0: i32, %arg1: i32) -> (i32, i32) {
    %c1_i32 = arith.constant 1 : i32
    %0 = arith.muli %arg0, %c1_i32 : i32
    %1 = arith.addi %0, %arg1 : i32
    %c0_i32 = arith.constant 0 : i32
    %2 = arith.minsi %1, %c0_i32 : i32
    %c0_i32_0 = arith.constant 0 : i32
    %c0_i32_1 = arith.constant 0 : i32
    return %2, %c0_i32_0 : i32, i32
  }
  func.func @transform_1(%arg0: i32, %arg1: i32) -> (i32, i32) {
    %c0_i32 = arith.constant 0 : i32
    %c0_i32_0 = arith.constant 0 : i32
    return %arg0, %c0_i32 : i32, i32
  }
}

</mosaic_0001>

<llo_original>
// kernel: tpu_custom_call.1
$region0: #{tpu_custom_call.1}
  #allocation0 [shape = 'u32[]', space=smem, size = 0x4, offset = 0x4, fixed_abs, tag = 'smem constant byte address 0x4 - core index']
  #allocation1 [shape = 'u32[144,128]{1,0:T(1,128)}', space=vmem, size = 0x12000, scoped, tag = 'internal scratch']
  #allocation2 [shape = 'f32[8,128]{1,0:T(8,128)}', space=vmem, size = 0x1000, scoped, tag = 'scratch operand']
  %s0 = inlined_call_operand.hbm [shape: f32[16,128], index: 0, kind: input, shape index: {}]
  %s1 = inlined_call_operand.hbm [shape: f32[8,128], index: 1, kind: output, shape index: {}]
  %s2 = sld [smem:[#allocation0]]
  $region26: #{tpu_custom_call.1} parent=0
    _
  %s4 = ssub.s32 1, %s2
  %s5 = scalar_select 0, %s4, %s2
  $region1: #{tpu_custom_call.1} parent=0
    #allocation3 [shape = 'u8[8192]{0}', space=vmem, size = 0x2000, scoped, tag = 'input window, operand 0, single buffered']
    #allocation4 [shape = 's32[1]{0}', space=sflag, size = 0x4, scoped, tag = 'scoped memory for tpu_custom_call.1']
    #allocation5 [shape = 's32[1]{0}', space=sflag, size = 0x4, scoped, tag = 'scoped memory for tpu_custom_call.1']
    #allocation6 [shape = 'u8[4096]{0}', space=vmem, size = 0x1000, scoped, tag = 'output window, operand 0, single buffered']
    %6 = vsyncpa [#allocation4], 0
    %7 = vsyncpa [#allocation5], 0
    // Predicated region
    $region2: #{tpu_custom_call.1} parent=1 // pred_check
      _
    $region3: #{tpu_custom_call.1} parent=1 // pred_check_branch
      %9 = sbr.rel (0) target = $region5
    $region4: #{tpu_custom_call.1} parent=1 // pred_region
      %s10 = sadd.s32 0, 0
      %p11 = scmp.lt.s32.totalorder %s10, 0
      %s12 = scalar_select %p11, %s10, 0
      %s13 = smul.u32 2, %s12
      %s15 = ssub.s32 256, 256
      %16 = vsyncadd [#allocation4], %s15
      %s17 = smul.addr %s13, 128
      %s18 = scalar_lea.hbm %s0, %s17
      %s19 = sshll.u32 [#allocation3], 4
      %s20 = int_to_ptr.vmem [resolvable:$true] %s19
      %25 = dma.hbm_to_vmem [thread:$0]  %s18, 256, %s20, [#allocation4], 128, 128, 8
    $region5: #{tpu_custom_call.1} parent=1 // pred_fallthru
      _
    // Predicated region
    $region6: #{tpu_custom_call.1} parent=1 // pred_check
      _
    $region7: #{tpu_custom_call.1} parent=1 // pred_check_branch
      %27 = sbr.rel (0) target = $region9
    $region8: #{tpu_custom_call.1} parent=1 // pred_region
      %28 = dma.done [#allocation4], 256
    $region9: #{tpu_custom_call.1} parent=1 // pred_fallthru
      _
    %s29 = sadd.s32 0, 0
    %p30 = scmp.lt.s32.totalorder %s29, 0
    %s31 = scalar_select %p30, %s29, 0
    %s32 = smul.u32 2, %s31
    %p33 = scmp.eq.s32.totalorder 0, 0
    // Predicated region
    $region10: #{tpu_custom_call.1} parent=1 // pred_check
      %p34 = pneg %p33
    $region11: #{tpu_custom_call.1} parent=1 // pred_check_branch
      %36 = sbr.rel (%p34) target = $region13
    $region12: #{tpu_custom_call.1} parent=1 // pred_region
      %37 = vst [vmem:[#allocation2] sm:$0xff] 0.0
    $region13: #{tpu_custom_call.1} parent=1 // pred_fallthru
      _
    %v38 = vld [vmem:[#allocation3] sm:$0xff]
    %v39 = vld [vmem:[#allocation3 + $0x8] sm:$0xff]
    %v40 = vadd.f32 %v38, %v39
    %v41 = vadd.f32 %v40, 0.0
    %v42 = vld [vmem:[#allocation2] sm:$0xff]
    %v43 = vadd.f32 %v42, %v41
    %44 = vst [vmem:[#allocation2] sm:$0xff] %v43
    // Predicated region
    $region14: #{tpu_custom_call.1} parent=1 // pred_check
      %p45 = pneg %p33
    $region15: #{tpu_custom_call.1} parent=1 // pred_check_branch
      %47 = sbr.rel (%p45) target = $region17
    $region16: #{tpu_custom_call.1} parent=1 // pred_region
      %v48 = vld [vmem:[#allocation2] sm:$0xff]
      %49 = vst [vmem:[#allocation6] sm:$0xff] %v48
    $region17: #{tpu_custom_call.1} parent=1 // pred_fallthru
      _
    // Predicated region
    $region18: #{tpu_custom_call.1} parent=1 // pred_check
      _
    $region19: #{tpu_custom_call.1} parent=1 // pred_check_branch
      %51 = sbr.rel (0) target = $region21
    $region20: #{tpu_custom_call.1} parent=1 // pred_region
      %s53 = ssub.s32 128, 128
      %54 = vsyncadd [#allocation5], %s53
      %s56 = sshll.u32 [#allocation6], 4
      %s57 = int_to_ptr.vmem [resolvable:$true] %s56
      %59 = dma.vmem_to_hbm [thread:$0]  %s57, 128, %s1, [#allocation5]
    $region21: #{tpu_custom_call.1} parent=1 // pred_fallthru
      _
    // Predicated region
    $region22: #{tpu_custom_call.1} parent=1 // pred_check
      _
    $region23: #{tpu_custom_call.1} parent=1 // pred_check_branch
      %61 = sbr.rel (0) target = $region25
    $region24: #{tpu_custom_call.1} parent=1 // pred_region
      %62 = dma.done [#allocation5], 128
    $region25: #{tpu_custom_call.1} parent=1 // pred_fallthru
      _
    %63 = vsyncpa [#allocation4], 1
    %64 = vsyncpa [#allocation5], 1

</llo_original>
